<compile_context>
chip_gen: v6e
topology: v6e:2x2x1
jax: 0.10.0
libtpu: 0.0.40
codegen_flags: <defaults>
</compile_context>

<pallas_src>
import jax
import jax.numpy as jnp
from jax.experimental import pallas as pl
from jax.experimental.pallas import tpu as pltpu


def linear_sigmoid_kernel(x_ref, w_ref, b_ref, o_ref):
    # Fused hot path: matmul on the MXU (f32 accumulation) + bias add,
    # then sigmoid with exp on the EUP and the reciprocal also on the EUP
    # (pl.reciprocal(approx=True) -> vrcp), keeping VALU slots free.
    z = jnp.dot(x_ref[...], w_ref[...], preferred_element_type=jnp.float32)
    z = z + b_ref[...]                                  # broadcast (1, C) over (TB, C)
    a = pl.reciprocal(1.0 + jnp.exp(-z), approx=True)   # MySigmoid: 1 / (1 + exp(-x))
    o_ref[...] = a.astype(o_ref.dtype)


def my_model_1layer(x, W, b, *, block_b=256):
    """Forward of MyModel1Layer: sigmoid(x @ W + b).

    The batch dimension is tiled so that, for large B, Pallas double-buffers
    the x / out tiles (DMA overlapped with MXU work) while W and b stay
    resident in VMEM across grid iterations. The batch grid axis is marked
    "parallel" so it can be sharded across both TensorCores on v7x.
    """
    B, F = x.shape
    F2, C = W.shape
    assert F == F2
    b2d = b.reshape(1, C)

    # Batch tile: full B if small (single grid step -> minimal fixed overhead
    # at tiny sizes), otherwise a sublane-aligned tile for pipelining.
    # VMEM budget (f32): 2 buffers * (TB*F + TB*C) * 4B + resident W/b.
    # With TB=256, F/C in the few-hundreds this is << v7x's 64 MiB VMEM.
    TB = B if B <= block_b else block_b
    grid = (pl.cdiv(B, TB),)

    return pl.pallas_call(
        linear_sigmoid_kernel,
        out_shape=jax.ShapeDtypeStruct((B, C), x.dtype),
        grid_spec=pltpu.PrefetchScalarGridSpec(
            num_scalar_prefetch=0,
            grid=grid,
            in_specs=[
                pl.BlockSpec((TB, F), lambda i: (i, 0)),   # streamed per batch tile
                pl.BlockSpec((F, C), lambda i: (0, 0)),    # weights resident in VMEM
                pl.BlockSpec((1, C), lambda i: (0, 0)),    # bias resident in VMEM
            ],
            out_specs=pl.BlockSpec((TB, C), lambda i: (i, 0)),
        ),
        compiler_params=pltpu.CompilerParams(
            # Independent batch tiles -> megacore-shardable on v7x; harmless on v5e/v6e.
            dimension_semantics=("parallel",),
        ),
    )(x, W, b2d)
    # TODO(synk): for large F/C, pad C (and F) to multiples of 128 and/or cast
    # x, W to bf16 (keeping f32 accumulation) to fill the MXU and use lane-dense
    # stores; at the module's tiny shapes this adds nothing.


if __name__ == "__main__":
    # Small shapes consistent with the module: batch=8, num_feature=32, num_class=16
    batch, num_feature, num_class = 8, 32, 16

    key = jax.random.PRNGKey(0)
    kx, kw, kb = jax.random.split(key, 3)
    # Deterministic "randn"-style init (module uses torch.randn for W, b)
    x = jax.random.normal(kx, (batch, num_feature), dtype=jnp.float32)
    W = jax.random.normal(kw, (num_feature, num_class), dtype=jnp.float32)
    b = jax.random.normal(kb, (num_class,), dtype=jnp.float32)

    out = my_model_1layer(x, W, b)
    jax.block_until_ready(out)

    # Reference check in plain JAX (looser tolerance: approx EUP reciprocal)
    ref = 1.0 / (1.0 + jnp.exp(-(x @ W + b)))
    assert out.shape == (batch, num_class)
    assert jnp.allclose(out, ref, atol=2e-3, rtol=2e-3)

    print("KERNEL_OK")
</pallas_src>

<mosaic_0001>
module attributes {stable_mosaic.version = 11 : i64} {
  func.func @linear_sigmoid_kernel(%arg0: i32, %arg1: memref<8x32xf32, #tpu.memory_space<vmem>>, %arg2: memref<32x16xf32, #tpu.memory_space<vmem>>, %arg3: memref<1x16xf32, #tpu.memory_space<vmem>>, %arg4: memref<8x16xf32, #tpu.memory_space<vmem>>) attributes {dimension_semantics = [#tpu.dimension_semantics<parallel>], iteration_bounds = array<i64: 1>, scalar_prefetch = 0 : i64, scratch_operands = 0 : i64, tpu.core_type = #tpu.core_type<tc>, window_params = [{transform_indices = @transform_0, window_bounds = array<i64: 8, 32>}, {pipeline_mode = #tpu.pipeline_mode<synchronous>, transform_indices = @transform_1, window_bounds = array<i64: 32, 16>}, {pipeline_mode = #tpu.pipeline_mode<synchronous>, transform_indices = @transform_2, window_bounds = array<i64: 1, 16>}, {transform_indices = @transform_3, window_bounds = array<i64: 8, 16>}]} {
    %c0 = arith.constant 0 : index
    %c0_0 = arith.constant 0 : index
    %0 = vector.load %arg1[%c0, %c0_0] : memref<8x32xf32, #tpu.memory_space<vmem>>, vector<8x32xf32>
    %c0_1 = arith.constant 0 : index
    %c0_2 = arith.constant 0 : index
    %1 = vector.load %arg2[%c0_1, %c0_2] : memref<32x16xf32, #tpu.memory_space<vmem>>, vector<32x16xf32>
    %cst = arith.constant dense<0.000000e+00> : vector<8x16xf32>
    %2 = tpu.matmul %0, %1, %cst {dimension_numbers = #tpu.dot_dimension_numbers<[1], [0], [0], [1], [0, 0, 1, 1], [], []>} : vector<8x32xf32>, vector<32x16xf32>, vector<8x16xf32> -> vector<8x16xf32>
    %c0_3 = arith.constant 0 : index
    %c0_4 = arith.constant 0 : index
    %3 = vector.load %arg3[%c0_3, %c0_4] : memref<1x16xf32, #tpu.memory_space<vmem>>, vector<1x16xf32>
    %4 = vector.broadcast %3 : vector<1x16xf32> to vector<8x16xf32>
    %5 = arith.addf %2, %4 : vector<8x16xf32>
    %cst_5 = arith.constant 0.000000e+00 : f32
    %6 = vector.broadcast %cst_5 : f32 to vector<8x16xf32>
    %7 = arith.subf %6, %5 : vector<8x16xf32>
    %8 = math.exp %7 : vector<8x16xf32>
    %cst_6 = arith.constant 1.000000e+00 : f32
    %9 = vector.broadcast %cst_6 : f32 to vector<8x16xf32>
    %10 = arith.addf %9, %8 : vector<8x16xf32>
    %11 = tpu.reciprocal %10 {approx = true} : vector<8x16xf32> -> vector<8x16xf32>
    %c0_7 = arith.constant 0 : index
    %c0_8 = arith.constant 0 : index
    %12 = vector.load %arg4[%c0_7, %c0_8] : memref<8x16xf32, #tpu.memory_space<vmem>>, vector<8x16xf32>
    tpu.vector_store %arg4[%c0_7, %c0_8], %11 {strides = array<i32>} : memref<8x16xf32, #tpu.memory_space<vmem>>, vector<8x16xf32>,
    return
  }
  func.func @transform_0(%arg0: i32) -> (i32, i32) {
    %c0_i32 = arith.constant 0 : i32
    %c0_i32_0 = arith.constant 0 : i32
    return %arg0, %c0_i32 : i32, i32
  }
  func.func @transform_1(%arg0: i32) -> (i32, i32) {
    %c0_i32 = arith.constant 0 : i32
    %c0_i32_0 = arith.constant 0 : i32
    %c0_i32_1 = arith.constant 0 : i32
    return %c0_i32, %c0_i32_0 : i32, i32
  }
  func.func @transform_2(%arg0: i32) -> (i32, i32) {
    %c0_i32 = arith.constant 0 : i32
    %c0_i32_0 = arith.constant 0 : i32
    %c0_i32_1 = arith.constant 0 : i32
    return %c0_i32, %c0_i32_0 : i32, i32
  }
  func.func @transform_3(%arg0: i32) -> (i32, i32) {
    %c0_i32 = arith.constant 0 : i32
    %c0_i32_0 = arith.constant 0 : i32
    return %arg0, %c0_i32 : i32, i32
  }
}

</mosaic_0001>

<llo_original>
// kernel: tpu_custom_call.1
$region0: #{tpu_custom_call.1}
  #allocation0 [shape = 'u32[]', space=smem, size = 0x4, offset = 0x4, fixed_abs, tag = 'smem constant byte address 0x4 - core index']
  #allocation1 [shape = 'u32[144,128]{1,0:T(1,128)}', space=vmem, size = 0x12000, scoped, tag = 'internal scratch']
  %s0 = inlined_call_operand.vmem [shape: f32[8,32], index: 0, kind: input, shape index: {}]
  %s1 = inlined_call_operand.vmem [shape: f32[32,16], index: 1, kind: input, shape index: {}]
  %s2 = inlined_call_operand.vmem [shape: f32[1,16], index: 2, kind: input, shape index: {}]
  %s3 = inlined_call_operand.hbm [shape: f32[8,16], index: 3, kind: output, shape index: {}]
  %s4 = sld [smem:[#allocation0]]
  $region22: #{tpu_custom_call.1} parent=0
    _
  %s6 = ssub.s32 1, %s4
  %s7 = scalar_select 0, %s6, %s4
  $region1: #{tpu_custom_call.1} parent=0
    #allocation2 [shape = 'u8[4096]{0}', space=vmem, size = 0x1000, scoped, tag = 'output window, operand 0, single buffered']
    #allocation3 [shape = 's32[1]{0}', space=sflag, size = 0x4, scoped, tag = 'scoped memory for tpu_custom_call.1']
    %8 = vsyncpa [#allocation3], 0
    // Predicated region
    $region2: #{tpu_custom_call.1} parent=1 // pred_check
      _
    $region3: #{tpu_custom_call.1} parent=1 // pred_check_branch
      %10 = sbr.rel (0) target = $region5
    $region4: #{tpu_custom_call.1} parent=1 // pred_region
      _
    $region5: #{tpu_custom_call.1} parent=1 // pred_fallthru
      _
    // Predicated region
    $region6: #{tpu_custom_call.1} parent=1 // pred_check
      _
    $region7: #{tpu_custom_call.1} parent=1 // pred_check_branch
      %12 = sbr.rel (0) target = $region9
    $region8: #{tpu_custom_call.1} parent=1 // pred_region
      _
    $region9: #{tpu_custom_call.1} parent=1 // pred_fallthru
      _
    // Predicated region
    $region10: #{tpu_custom_call.1} parent=1 // pred_check
      _
    $region11: #{tpu_custom_call.1} parent=1 // pred_check_branch
      %14 = sbr.rel (0) target = $region13
    $region12: #{tpu_custom_call.1} parent=1 // pred_region
      _
    $region13: #{tpu_custom_call.1} parent=1 // pred_fallthru
      _
    %v15 = vld [vmem:[%s0] sm:$0xff]
    %v16 = vld [vmem:[%s1] sm:$0xff]
    %v17 = vld [vmem:[%s1 + $0x8] sm:$0xff]
    %v18 = vld [vmem:[%s1 + $0x10] sm:$0xff]
    %v19 = vld [vmem:[%s1 + $0x18] sm:$0xff]
    %v20 = vld [vmem:[%s2] sm:$0x1]
    %v22 = vlaneseq
    %v23 = vshrl.u32 %v22, 7
    %v24 = vsub.s32 0, %v23
    %v25 = vrot.slane %v20, %v24
    %vm27 = vcmask 261120
    %v29 = vsel %vm27, %v15, 0
    %31 = vmatprep.subr.mxu0 0.0
    %32 = vmatpush1.msra.mxu0 0.0
    %33 = vmatprep.subr.mxu0 0.0
    %34 = vmatpush1.msra.mxu0 0.0
    %35 = vmatprep.subr.mxu0 0.0
    %36 = vmatpush1.msra.mxu0 0.0
    %37 = vmatprep.subr.mxu0 0.0
    %38 = vmatpush1.msra.mxu0 0.0
    %39 = vmatprep.subr.mxu0 0.0
    %40 = vmatpush1.msra.mxu0 0.0
    %41 = vmatprep.subr.mxu0 0.0
    %42 = vmatpush1.msra.mxu0 0.0
    %43 = vmatprep.subr.mxu0 0.0
    %44 = vmatpush1.msra.mxu0 0.0
    %45 = vmatprep.subr.mxu0 0.0
    %46 = vmatpush1.msra.mxu0 0.0
    %47 = vmatprep.subr.mxu0 0.0
    %48 = vmatpush1.msra.mxu0 0.0
    %49 = vmatprep.subr.mxu0 0.0
    %50 = vmatpush1.msra.mxu0 0.0
    %51 = vmatprep.subr.mxu0 0.0
    %52 = vmatpush1.msra.mxu0 0.0
    %53 = vmatprep.subr.mxu0 0.0
    %54 = vmatpush1.msra.mxu0 0.0
    %55 = vmatprep.subr.mxu0 0.0
    %56 = vmatpush1.msra.mxu0 %v19
    %57 = vmatprep.subr.mxu0 0.0
    %58 = vmatpush1.msra.mxu0 %v18
    %59 = vmatprep.subr.mxu0 0.0
    %60 = vmatpush1.msra.mxu0 %v17
    %61 = vmatprep.subr.mxu0 0.0
    %62 = vmatpush1.msra.mxu0 %v16
    %63 = vmatprep.subr.mxu0 0.0
    %64 = vmatpush2.msra.mxu0 0.0
    %65 = vmatprep.subr.mxu0 0.0
    %66 = vmatpush2.msra.mxu0 0.0
    %67 = vmatprep.subr.mxu0 0.0
    %68 = vmatpush2.msra.mxu0 0.0
    %69 = vmatprep.subr.mxu0 0.0
    %70 = vmatpush2.msra.mxu0 0.0
    %71 = vmatprep.subr.mxu0 0.0
    %72 = vmatpush2.msra.mxu0 0.0
    %73 = vmatprep.subr.mxu0 0.0
    %74 = vmatpush2.msra.mxu0 0.0
    %75 = vmatprep.subr.mxu0 0.0
    %76 = vmatpush2.msra.mxu0 0.0
    %77 = vmatprep.subr.mxu0 0.0
    %78 = vmatpush2.msra.mxu0 0.0
    %79 = vmatprep.subr.mxu0 0.0
    %80 = vmatpush2.msra.mxu0 0.0
    %81 = vmatprep.subr.mxu0 0.0
    %82 = vmatpush2.msra.mxu0 0.0
    %83 = vmatprep.subr.mxu0 0.0
    %84 = vmatpush2.msra.mxu0 0.0
    %85 = vmatprep.subr.mxu0 0.0
    %86 = vmatpush2.msra.mxu0 0.0
    %87 = vmatprep.subr.mxu0 0.0
    %88 = vmatpush2.msra.mxu0 0.0
    %89 = vmatprep.subr.mxu0 0.0
    %90 = vmatpush2.msra.mxu0 0.0
    %91 = vmatprep.subr.mxu0 0.0
    %92 = vmatpush2.msra.mxu0 0.0
    %93 = vmatprep.subr.mxu0 0.0
    %94 = vmatpush2.msra.mxu0 0.0
    %95 = vmatprep.mubr.f32.mxu0 0.0
    %96 = vmatmul.mubr.f32.gmra.mxu0 %v29
    %v97 = vpop.f32.mrf.mxu0
    %v98 = vadd.f32 %v25, %v97
    %v99 = vpop.f32.mrf.mxu0
    %100 = vdwg.mxu0
    %v101 = vsub.f32 0.0, %v98
    %v102 = vmul.f32 %v101, 1.442695
    %v103 = vpow.pop %v102
    %v104 = vadd.f32 %v103, 1.0
    %v105 = vrcp.pop %v104
    %vm106 = vcmask 130048
    %107 = vst.msk [vmem:[#allocation2] sm:$0xff] %vm106, %v105
    // Predicated region
    $region14: #{tpu_custom_call.1} parent=1 // pred_check
      _
    $region15: #{tpu_custom_call.1} parent=1 // pred_check_branch
      %109 = sbr.rel (0) target = $region17
    $region16: #{tpu_custom_call.1} parent=1 // pred_region
      %s111 = ssub.s32 128, 128
      %112 = vsyncadd [#allocation3], %s111
      %s114 = sshll.u32 [#allocation2], 4
      %s115 = int_to_ptr.vmem [resolvable:$true] %s114
      %117 = dma.vmem_to_hbm [thread:$0]  %s115, 128, %s3, [#allocation3]
    $region17: #{tpu_custom_call.1} parent=1 // pred_fallthru
      _
    // Predicated region
    $region18: #{tpu_custom_call.1} parent=1 // pred_check
      _
    $region19: #{tpu_custom_call.1} parent=1 // pred_check_branch
      %119 = sbr.rel (0) target = $region21
    $region20: #{tpu_custom_call.1} parent=1 // pred_region
      %120 = dma.done [#allocation3], 128
    $region21: #{tpu_custom_call.1} parent=1 // pred_fallthru
      _
    %121 = vsyncpa [#allocation3], 1

</llo_original>
